<compile_context>
chip_gen: v5e
topology: v5e:2x2
jax: 0.10.0
libtpu: 0.0.40
codegen_flags: <defaults>
</compile_context>

<pallas_src>
import functools
import math

import jax
import jax.numpy as jnp
from jax.experimental import pallas as pl
from jax.experimental.pallas import tpu as pltpu


_VMEM_LIMIT = 48 * 1024 * 1024   # < v7x physical 64 MiB, < v5e/v6e 128 MiB


def _round_up(x, m):
    return (x + m - 1) // m * m


def _row_tile(m, cap=256):
    """Largest row tile (multiple of 16, <= cap) dividing m.  m is always a
    multiple of 16 because T is padded to a multiple of 16."""
    for t in (cap, 128, 64, 32, 16):
        if m >= t and m % t == 0:
            return t
    return m


# ---------------------------------------------------------------------------
# Kernel 1: input stage  out = LayerNorm(x @ W_in + b_in) + PE       (grid = B)
# ---------------------------------------------------------------------------
def _input_proj_ln_pe_kernel(x_ref, w_ref, b_ref, g_ref, beta_ref, pe_ref, o_ref):
    x = x_ref[...].astype(jnp.bfloat16)
    y = jnp.dot(x, w_ref[...], preferred_element_type=jnp.float32) + b_ref[...]
    mean = jnp.mean(y, axis=-1, keepdims=True)
    var = jnp.mean(jnp.square(y - mean), axis=-1, keepdims=True)
    y = (y - mean) * jax.lax.rsqrt(var + 1e-5)
    # TODO(synk): dropout after the PE add skipped — eval-mode identity.
    o_ref[...] = y * g_ref[...] + beta_ref[...] + pe_ref[...]


def pallas_input_proj_ln_pe(x, w_bf16, b, g, beta, pe):
    B, T, d_input = x.shape
    d_model = w_bf16.shape[1]
    return pl.pallas_call(
        _input_proj_ln_pe_kernel,
        out_shape=jax.ShapeDtypeStruct((B, T, d_model), jnp.float32),
        grid=(B,),
        in_specs=[
            pl.BlockSpec((None, T, d_input), lambda i: (i, 0, 0)),
            pl.BlockSpec((d_input, d_model), lambda i: (0, 0)),
            pl.BlockSpec((1, d_model), lambda i: (0, 0)),
            pl.BlockSpec((1, d_model), lambda i: (0, 0)),
            pl.BlockSpec((1, d_model), lambda i: (0, 0)),
            pl.BlockSpec((T, d_model), lambda i: (0, 0)),
        ],
        out_specs=pl.BlockSpec((None, T, d_model), lambda i: (i, 0, 0)),
        compiler_params=pltpu.CompilerParams(dimension_semantics=("parallel",)),
    )(x, w_bf16, b, g, beta, pe)


# ---------------------------------------------------------------------------
# Kernel 2: head-merged QKV projection, grid (3, M//tm), bf16 output
# ---------------------------------------------------------------------------
def _qkv_proj_kernel(x_ref, w_ref, b_ref, o_ref):
    acc = jnp.dot(x_ref[...].astype(jnp.bfloat16), w_ref[...],
                  preferred_element_type=jnp.float32) + b_ref[...]
    o_ref[...] = acc.astype(o_ref.dtype)


def pallas_qkv_proj(x, w_qkv_bf16, b_qkv):
    """x: (M, d_model) f32; w_qkv: (3, d_model, H*dh) bf16; b: (3, 1, H*dh) f32
    -> (3, M, H*dh) bf16 (head-major last dim, same layout as torch Linear)."""
    M, d_model = x.shape
    n_out = w_qkv_bf16.shape[2]
    tm = _row_tile(M)
    flops = 2 * M * d_model * 3 * n_out
    bytes_acc = (4 * 3 * M * d_model + 2 * 3 * d_model * n_out
                 + 4 * 3 * n_out + 2 * 3 * M * n_out)
    return pl.pallas_call(
        _qkv_proj_kernel,
        out_shape=jax.ShapeDtypeStruct((3, M, n_out), jnp.bfloat16),
        grid=(3, M // tm),
        in_specs=[
            pl.BlockSpec((tm, d_model), lambda s, i: (i, 0)),
            pl.BlockSpec((None, d_model, n_out), lambda s, i: (s, 0, 0)),
            pl.BlockSpec((None, 1, n_out), lambda s, i: (s, 0, 0)),
        ],
        out_specs=pl.BlockSpec((None, tm, n_out), lambda s, i: (s, i, 0)),
        compiler_params=pltpu.CompilerParams(
            dimension_semantics=("parallel", "parallel")),
        cost_estimate=pl.CostEstimate(flops=flops, transcendentals=0,
                                      bytes_accessed=bytes_acc),
    )(x, w_qkv_bf16, b_qkv)


# ---------------------------------------------------------------------------
# Kernel 3: attention + merged fc + residual + LayerNorm + non_pad mask
#           (grid = batch; fc fused -> no ctx HBM round trip, lane-dense out)
# ---------------------------------------------------------------------------
def _attn_fc_ln_kernel(qkv_ref, kpm_ref, wfc_ref, bfc_ref, res_ref, g_ref,
                       beta_ref, npm_ref, o_ref, *attn_ref,
                       n_head, d_head, inv_temp):
    q = qkv_ref[0]                                   # (T, H*dh) bf16
    k = qkv_ref[1]
    v = qkv_ref[2]
    neg = kpm_ref[...] * (-1e30)                     # (1, T) f32, key-pad mask
    ctx_parts = []
    for h in range(n_head):                          # unrolled at trace time
        lo = h * d_head
        qh = q[:, lo:lo + d_head]                    # static lane slices
        kh = k[:, lo:lo + d_head]
        vh = v[:, lo:lo + d_head]
        # q @ k^T via contracting dims (no transpose materialised), f32 acc.
        s = jax.lax.dot_general(qh, kh, (((1,), (1,)), ((), ())),
                                preferred_element_type=jnp.float32) * inv_temp
        s = s + neg
        m = jnp.max(s, axis=-1, keepdims=True)
        e = jnp.exp(s - m)
        attn_h = e * pl.reciprocal(jnp.sum(e, axis=-1, keepdims=True), approx=True)
        # TODO(synk): attention dropout (p=0.1) skipped — eval-mode identity.
        ctx_parts.append(jnp.dot(attn_h.astype(jnp.bfloat16), vh,
                                 preferred_element_type=jnp.float32))
        if attn_ref:
            attn_ref[0][h, :, :] = attn_h
    # merged output projection: one full-depth (K = H*dv) MXU matmul
    ctx = jnp.concatenate(ctx_parts, axis=-1).astype(jnp.bfloat16)   # (T, H*dv)
    y = jnp.dot(ctx, wfc_ref[...], preferred_element_type=jnp.float32)
    # TODO(synk): post-fc dropout (p=0.1) skipped — eval-mode identity.
    y = y + bfc_ref[...] + res_ref[...]
    mean = jnp.mean(y, axis=-1, keepdims=True)
    var = jnp.mean(jnp.square(y - mean), axis=-1, keepdims=True)
    y = (y - mean) * jax.lax.rsqrt(var + 1e-5)
    o_ref[...] = (y * g_ref[...] + beta_ref[...]) * npm_ref[...]


def pallas_attn_fc_ln_mask(qkv, key_pad, w_fc_bf16, b_fc, residual, gamma, beta,
                           non_pad3, n_head, d_head, inv_temp, return_attn):
    """qkv: (3, B, T, H*dh) bf16; key_pad: (B, 1, T) f32 (1.0 = padded key)."""
    _, B, T, n_out = qkv.shape
    d_model = w_fc_bf16.shape[1]
    kernel = functools.partial(_attn_fc_ln_kernel, n_head=n_head,
                               d_head=d_head, inv_temp=inv_temp)
    out_shape = [jax.ShapeDtypeStruct((B, T, d_model), jnp.float32)]
    out_specs = [pl.BlockSpec((None, T, d_model), lambda b: (b, 0, 0))]
    if return_attn:
        # f32 kept here for the tight correctness check; gated by the flag.
        out_shape.append(jax.ShapeDtypeStruct((n_head, B, T, T), jnp.float32))
        out_specs.append(pl.BlockSpec((n_head, None, T, T), lambda b: (0, b, 0, 0)))
    flops = B * (4 * n_head * T * T * d_head + 2 * T * n_out * d_model)
    bytes_acc = (2 * 3 * B * T * n_out + 4 * B * T + 2 * n_out * d_model
                 + 4 * B * T * d_model * 2 + 4 * B * T)
    if return_attn:
        bytes_acc += 4 * n_head * B * T * T
    outs = pl.pallas_call(
        kernel,
        out_shape=tuple(out_shape),
        grid=(B,),
        in_specs=[
            pl.BlockSpec((3, None, T, n_out), lambda b: (0, b, 0, 0)),
            pl.BlockSpec((None, 1, T), lambda b: (b, 0, 0)),
            pl.BlockSpec((n_out, d_model), lambda b: (0, 0)),
            pl.BlockSpec((1, d_model), lambda b: (0, 0)),
            pl.BlockSpec((None, T, d_model), lambda b: (b, 0, 0)),
            pl.BlockSpec((1, d_model), lambda b: (0, 0)),
            pl.BlockSpec((1, d_model), lambda b: (0, 0)),
            pl.BlockSpec((None, T, 1), lambda b: (b, 0, 0)),
        ],
        out_specs=tuple(out_specs),
        compiler_params=pltpu.CompilerParams(
            dimension_semantics=("parallel",), vmem_limit_bytes=_VMEM_LIMIT),
        cost_estimate=pl.CostEstimate(flops=flops,
                                      transcendentals=n_head * B * T * T,
                                      bytes_accessed=bytes_acc),
    )(qkv, key_pad, w_fc_bf16, b_fc, residual, gamma, beta, non_pad3)
    enc = outs[0]
    attn = outs[1] if return_attn else None
    return enc, attn


# ---------------------------------------------------------------------------
# Kernel 4: position-wise FFN + residual + LayerNorm + non_pad mask (row-tiled)
# ---------------------------------------------------------------------------
def _ffn_residual_ln_kernel(x_ref, w1_ref, b1_ref, w2_ref, b2_ref, g_ref,
                            beta_ref, npm_ref, o_ref):
    x = x_ref[...]
    h = jnp.dot(x.astype(jnp.bfloat16), w1_ref[...],
                preferred_element_type=jnp.float32) + b1_ref[...]
    h = jnp.maximum(h, 0.0)
    # TODO(synk): FFN dropout (p=0.1) skipped — eval-mode identity.
    y = jnp.dot(h.astype(jnp.bfloat16), w2_ref[...],
                preferred_element_type=jnp.float32) + b2_ref[...] + x
    mean = jnp.mean(y, axis=-1, keepdims=True)
    var = jnp.mean(jnp.square(y - mean), axis=-1, keepdims=True)
    y = (y - mean) * jax.lax.rsqrt(var + 1e-5)
    o_ref[...] = (y * g_ref[...] + beta_ref[...]) * npm_ref[...]


def pallas_ffn_residual_ln_mask(x, w1_bf16, b1, w2_bf16, b2, gamma, beta, non_pad):
    M, d_model = x.shape
    d_inner = w1_bf16.shape[1]
    tm = _row_tile(M, cap=256)       # v7x-safe resident set at d_inner=2048
    flops = 4 * M * d_model * d_inner
    bytes_acc = (8 * M * d_model + 2 * 2 * d_model * d_inner
                 + 4 * (d_inner + 3 * d_model) + 4 * M)
    return pl.pallas_call(
        _ffn_residual_ln_kernel,
        out_shape=jax.ShapeDtypeStruct((M, d_model), jnp.float32),
        grid=(M // tm,),
        in_specs=[
            pl.BlockSpec((tm, d_model), lambda i: (i, 0)),
            pl.BlockSpec((d_model, d_inner), lambda i: (0, 0)),
            pl.BlockSpec((1, d_inner), lambda i: (0, 0)),
            pl.BlockSpec((d_inner, d_model), lambda i: (0, 0)),
            pl.BlockSpec((1, d_model), lambda i: (0, 0)),
            pl.BlockSpec((1, d_model), lambda i: (0, 0)),
            pl.BlockSpec((1, d_model), lambda i: (0, 0)),
            pl.BlockSpec((tm, 1), lambda i: (i, 0)),
        ],
        out_specs=pl.BlockSpec((tm, d_model), lambda i: (i, 0)),
        compiler_params=pltpu.CompilerParams(
            dimension_semantics=("parallel",), vmem_limit_bytes=_VMEM_LIMIT),
        cost_estimate=pl.CostEstimate(flops=flops, transcendentals=0,
                                      bytes_accessed=bytes_acc),
    )(x, w1_bf16, b1, w2_bf16, b2, gamma, beta, non_pad)


# ---------------------------------------------------------------------------
# TransEncoder forward (Pallas kernels + free reshapes / cheap pads as glue)
# ---------------------------------------------------------------------------
def trans_encoder_forward(params, padded_input, input_lengths, return_attns=False):
    B, T, _ = padded_input.shape
    d_model = params["w_in"].shape[1]
    n_head, d_k = params["n_head"], params["d_k"]
    bf16 = jnp.bfloat16

    # pad time to a multiple of 16 (extra positions are treated as padding)
    T_pad = _round_up(T, 16)
    if T_pad != T:
        padded_input = jnp.pad(padded_input, ((0, 0), (0, T_pad - T), (0, 0)))
    M = B * T_pad

    pos = jnp.arange(T_pad, dtype=jnp.int32)
    non_pad = (pos[None, :] < input_lengths[:, None]).astype(jnp.float32)  # (B,Tp)
    key_pad = (1.0 - non_pad).reshape(B, 1, T_pad)                         # 1 = pad
    non_pad3 = non_pad.reshape(B, T_pad, 1)
    non_pad_col = non_pad.reshape(M, 1)

    enc = pallas_input_proj_ln_pe(
        padded_input, params["w_in"].astype(bf16), params["b_in"],
        params["ln_in_g"], params["ln_in_b"], params["pe"][:T_pad])

    attn_list = []
    inv_temp = 1.0 / (float(d_k) ** 0.5)
    for lp in params["layers"]:
        enc_flat = enc.reshape(M, d_model)                                  # free
        qkv = pallas_qkv_proj(enc_flat, lp["w_qkv"].astype(bf16), lp["b_qkv"])
        qkv = qkv.reshape(3, B, T_pad, n_head * d_k)                        # free

        enc, attn = pallas_attn_fc_ln_mask(
            qkv, key_pad, lp["w_fc"].astype(bf16), lp["b_fc"], enc,
            lp["ln1_g"], lp["ln1_b"], non_pad3,
            n_head, d_k, inv_temp, return_attns)

        enc_flat = pallas_ffn_residual_ln_mask(
            enc.reshape(M, d_model), lp["w1"].astype(bf16), lp["b1"],
            lp["w2"].astype(bf16), lp["b2"],
            lp["ln2_g"], lp["ln2_b"], non_pad_col)
        enc = enc_flat.reshape(B, T_pad, d_model)

        if return_attns:
            attn_list.append(attn[:, :, :T, :T].reshape(n_head * B, T, T))
    return enc[:, :T], attn_list


# ---------------------------------------------------------------------------
# Deterministic parameters (merged-head layouts) + PE table
# ---------------------------------------------------------------------------
def make_positional_encoding(max_len, d_model):
    position = jnp.arange(max_len, dtype=jnp.float32)[:, None]
    div_term = jnp.exp(jnp.arange(0, d_model, 2, dtype=jnp.float32)
                       * (-(math.log(10000.0) / d_model)))
    pe = jnp.zeros((max_len, d_model), jnp.float32)
    pe = pe.at[:, 0::2].set(jnp.sin(position * div_term))
    pe = pe.at[:, 1::2].set(jnp.cos(position * div_term))
    return pe


def init_params(key, d_input, n_layers, n_head, d_k, d_v, d_model, d_inner, pe_maxlen):
    assert d_k == d_v, "fused QKV projection path assumes d_k == d_v"
    ks = iter(jax.random.split(key, 4 + 10 * n_layers))

    def nrm(shape, std):
        return std * jax.random.normal(next(ks), shape, jnp.float32)

    params = {
        "n_head": n_head, "d_k": d_k,
        "w_in": nrm((d_input, d_model), (2.0 / (d_input + d_model)) ** 0.5),
        "b_in": jnp.zeros((1, d_model), jnp.float32),
        "ln_in_g": jnp.ones((1, d_model), jnp.float32),
        "ln_in_b": jnp.zeros((1, d_model), jnp.float32),
        "pe": make_positional_encoding(pe_maxlen, d_model),
        "layers": [],
    }
    std_qk = (2.0 / (d_model + d_k)) ** 0.5
    std_v = (2.0 / (d_model + d_v)) ** 0.5
    std_fc = (2.0 / (n_head * d_v + d_model)) ** 0.5
    std_ff = (2.0 / (d_model + d_inner)) ** 0.5
    for _ in range(n_layers):
        w_q = nrm((d_model, n_head * d_k), std_qk)
        w_k = nrm((d_model, n_head * d_k), std_qk)
        w_v = nrm((d_model, n_head * d_v), std_v)
        params["layers"].append({
            "w_qkv": jnp.stack([w_q, w_k, w_v], axis=0),      # (3, d_model, H*dh)
            "b_qkv": 0.01 * jax.random.normal(next(ks), (3, 1, n_head * d_k), jnp.float32),
            "w_fc": nrm((n_head * d_v, d_model), std_fc),     # merged, head-major rows
            "b_fc": jnp.zeros((1, d_model), jnp.float32),
            "ln1_g": jnp.ones((1, d_model), jnp.float32),
            "ln1_b": jnp.zeros((1, d_model), jnp.float32),
            "w1": nrm((d_model, d_inner), std_ff),
            "b1": 0.01 * jax.random.normal(next(ks), (1, d_inner), jnp.float32),
            "w2": nrm((d_inner, d_model), std_ff),
            "b2": 0.01 * jax.random.normal(next(ks), (1, d_model), jnp.float32),
            "ln2_g": jnp.ones((1, d_model), jnp.float32),
            "ln2_b": jnp.zeros((1, d_model), jnp.float32),
        })
    return params


# ---------------------------------------------------------------------------
# Pure-JAX f32 reference (faithful eval-mode translation of the PyTorch module)
# ---------------------------------------------------------------------------
def _layer_norm_ref(x, g, b, eps=1e-5):
    mean = jnp.mean(x, axis=-1, keepdims=True)
    var = jnp.mean((x - mean) ** 2, axis=-1, keepdims=True)
    return (x - mean) * jax.lax.rsqrt(var + eps) * g + b


def reference_trans_encoder(params, x, input_lengths):
    B, T, _ = x.shape
    n_head, d_k = params["n_head"], params["d_k"]
    pos = jnp.arange(T)
    non_pad = (pos[None, :] < input_lengths[:, None]).astype(jnp.float32)
    key_pad = non_pad < 0.5
    npm = non_pad[:, :, None]

    h = x @ params["w_in"] + params["b_in"]
    h = _layer_norm_ref(h, params["ln_in_g"], params["ln_in_b"])
    enc = h + params["pe"][None, :T]
    attns = []
    for lp in params["layers"]:
        residual = enc

        def proj(i, e=enc, lp=lp):
            y = e @ lp["w_qkv"][i] + lp["b_qkv"][i]
            return y.reshape(B, T, n_head, d_k).transpose(2, 0, 1, 3)  # (H,B,T,dh)

        qh, kh, vh = proj(0), proj(1), proj(2)
        s = jnp.einsum("hbqd,hbkd->hbqk", qh, kh) / (float(d_k) ** 0.5)
        s = jnp.where(key_pad[None, :, None, :], -1e30, s)
        attn = jax.nn.softmax(s, axis=-1)
        ctx = jnp.einsum("hbqk,hbkd->hbqd", attn, vh)
        ctx = ctx.transpose(1, 2, 0, 3).reshape(B, T, -1)               # head-major
        y = ctx @ lp["w_fc"] + lp["b_fc"] + residual
        enc = _layer_norm_ref(y, lp["ln1_g"], lp["ln1_b"]) * npm
        residual = enc
        hh = jnp.maximum(enc @ lp["w1"] + lp["b1"], 0.0)
        y = hh @ lp["w2"] + lp["b2"] + residual
        enc = _layer_norm_ref(y, lp["ln2_g"], lp["ln2_b"]) * npm
        attns.append(attn.reshape(n_head * B, T, T))
    return enc, attns


if __name__ == "__main__":
    B, T = 2, 12                     # T not a multiple of 16 -> exercises padding
    d_input, d_model, d_inner = 24, 32, 64
    n_layers, n_head, d_k, d_v = 2, 4, 8, 8

    key = jax.random.PRNGKey(0)
    kx, kp = jax.random.split(key)
    x = jax.random.normal(kx, (B, T, d_input), jnp.float32)
    input_lengths = jnp.array([T, 7], dtype=jnp.int32)
    params = init_params(kp, d_input, n_layers, n_head, d_k, d_v, d_model,
                         d_inner, pe_maxlen=64)

    enc, attns = trans_encoder_forward(params, x, input_lengths, return_attns=True)
    enc = jax.block_until_ready(enc)
    attns = [jax.block_until_ready(a) for a in attns]

    enc_ref, attns_ref = reference_trans_encoder(params, x, input_lengths)
    assert enc.shape == (B, T, d_model)
    assert len(attns) == n_layers
    # bf16 matmul inputs (f32 accumulation) vs f32 reference -> loose tolerance
    max_err = float(jnp.max(jnp.abs(enc - enc_ref)))
    assert jnp.allclose(enc, enc_ref, rtol=5e-2, atol=5e-2), max_err
    for a, ar in zip(attns, attns_ref):
        assert a.shape == (n_head * B, T, T)
        assert jnp.allclose(a, ar, rtol=5e-2, atol=5e-2), \
            float(jnp.max(jnp.abs(a - ar)))

    print("KERNEL_OK")
</pallas_src>

<mosaic_0001>
module attributes {stable_mosaic.version = 11 : i64} {
  func.func @_input_proj_ln_pe_kernel(%arg0: i32, %arg1: memref<1x16x24xf32, #tpu.memory_space<vmem>>, %arg2: memref<24x32xbf16, #tpu.memory_space<vmem>>, %arg3: memref<1x32xf32, #tpu.memory_space<vmem>>, %arg4: memref<1x32xf32, #tpu.memory_space<vmem>>, %arg5: memref<1x32xf32, #tpu.memory_space<vmem>>, %arg6: memref<16x32xf32, #tpu.memory_space<vmem>>, %arg7: memref<1x16x32xf32, #tpu.memory_space<vmem>>) attributes {dimension_semantics = [#tpu.dimension_semantics<parallel>], iteration_bounds = array<i64: 2>, scalar_prefetch = 0 : i64, scratch_operands = 0 : i64, tpu.core_type = #tpu.core_type<tc>, window_params = [{transform_indices = @transform_0, window_bounds = array<i64: 1, 16, 24>}, {pipeline_mode = #tpu.pipeline_mode<synchronous>, transform_indices = @transform_1, window_bounds = array<i64: 24, 32>}, {pipeline_mode = #tpu.pipeline_mode<synchronous>, transform_indices = @transform_2, window_bounds = array<i64: 1, 32>}, {pipeline_mode = #tpu.pipeline_mode<synchronous>, transform_indices = @transform_3, window_bounds = array<i64: 1, 32>}, {pipeline_mode = #tpu.pipeline_mode<synchronous>, transform_indices = @transform_4, window_bounds = array<i64: 1, 32>}, {pipeline_mode = #tpu.pipeline_mode<synchronous>, transform_indices = @transform_5, window_bounds = array<i64: 16, 32>}, {transform_indices = @transform_6, window_bounds = array<i64: 1, 16, 32>}]} {
    %c0 = arith.constant 0 : index
    %c0_0 = arith.constant 0 : index
    %c0_1 = arith.constant 0 : index
    %0 = vector.load %arg1[%c0, %c0_0, %c0_1] : memref<1x16x24xf32, #tpu.memory_space<vmem>>, vector<1x16x24xf32>
    %1 = vector.shape_cast %0 : vector<1x16x24xf32> to vector<16x24xf32>
    %2 = arith.truncf %1 : vector<16x24xf32> to vector<16x24xbf16>
    %c0_2 = arith.constant 0 : index
    %c0_3 = arith.constant 0 : index
    %3 = vector.load %arg2[%c0_2, %c0_3] : memref<24x32xbf16, #tpu.memory_space<vmem>>, vector<24x32xbf16>
    %cst = arith.constant dense<0.000000e+00> : vector<16x32xf32>
    %4 = tpu.matmul %2, %3, %cst {dimension_numbers = #tpu.dot_dimension_numbers<[1], [0], [0], [1], [0, 0, 1, 1], [], []>} : vector<16x24xbf16>, vector<24x32xbf16>, vector<16x32xf32> -> vector<16x32xf32>
    %c0_4 = arith.constant 0 : index
    %c0_5 = arith.constant 0 : index
    %5 = vector.load %arg3[%c0_4, %c0_5] : memref<1x32xf32, #tpu.memory_space<vmem>>, vector<1x32xf32>
    %6 = vector.broadcast %5 : vector<1x32xf32> to vector<16x32xf32>
    %7 = arith.addf %4, %6 : vector<16x32xf32>
    %cst_6 = arith.constant dense<0.000000e+00> : vector<16xf32>
    %8 = vector.multi_reduction <add>, %7, %cst_6 [1] : vector<16x32xf32> to vector<16xf32>
    %9 = vector.shape_cast %8 : vector<16xf32> to vector<16x1xf32>
    %cst_7 = arith.constant 3.200000e+01 : f32
    %10 = vector.broadcast %cst_7 : f32 to vector<16x1xf32>
    %11 = arith.divf %9, %10 : vector<16x1xf32>
    %12 = vector.broadcast %11 : vector<16x1xf32> to vector<16x32xf32>
    %13 = arith.subf %7, %12 : vector<16x32xf32>
    %14 = arith.mulf %13, %13 : vector<16x32xf32>
    %cst_8 = arith.constant dense<0.000000e+00> : vector<16xf32>
    %15 = vector.multi_reduction <add>, %14, %cst_8 [1] : vector<16x32xf32> to vector<16xf32>
    %16 = vector.shape_cast %15 : vector<16xf32> to vector<16x1xf32>
    %cst_9 = arith.constant 3.200000e+01 : f32
    %17 = vector.broadcast %cst_9 : f32 to vector<16x1xf32>
    %18 = arith.divf %16, %17 : vector<16x1xf32>
    %19 = vector.broadcast %11 : vector<16x1xf32> to vector<16x32xf32>
    %20 = arith.subf %7, %19 : vector<16x32xf32>
    %cst_10 = arith.constant 9.99999974E-6 : f32
    %21 = vector.broadcast %cst_10 : f32 to vector<16x1xf32>
    %22 = arith.addf %18, %21 : vector<16x1xf32>
    %23 = math.rsqrt %22 : vector<16x1xf32>
    %24 = vector.broadcast %23 : vector<16x1xf32> to vector<16x32xf32>
    %25 = arith.mulf %20, %24 : vector<16x32xf32>
    %c0_11 = arith.constant 0 : index
    %c0_12 = arith.constant 0 : index
    %26 = vector.load %arg4[%c0_11, %c0_12] : memref<1x32xf32, #tpu.memory_space<vmem>>, vector<1x32xf32>
    %27 = vector.broadcast %26 : vector<1x32xf32> to vector<16x32xf32>
    %28 = arith.mulf %25, %27 : vector<16x32xf32>
    %c0_13 = arith.constant 0 : index
    %c0_14 = arith.constant 0 : index
    %29 = vector.load %arg5[%c0_13, %c0_14] : memref<1x32xf32, #tpu.memory_space<vmem>>, vector<1x32xf32>
    %30 = vector.broadcast %29 : vector<1x32xf32> to vector<16x32xf32>
    %31 = arith.addf %28, %30 : vector<16x32xf32>
    %c0_15 = arith.constant 0 : index
    %c0_16 = arith.constant 0 : index
    %32 = vector.load %arg6[%c0_15, %c0_16] : memref<16x32xf32, #tpu.memory_space<vmem>>, vector<16x32xf32>
    %33 = arith.addf %31, %32 : vector<16x32xf32>
    %c0_17 = arith.constant 0 : index
    %c0_18 = arith.constant 0 : index
    %c0_19 = arith.constant 0 : index
    %34 = vector.load %arg7[%c0_17, %c0_18, %c0_19] : memref<1x16x32xf32, #tpu.memory_space<vmem>>, vector<1x16x32xf32>
    %35 = vector.shape_cast %34 : vector<1x16x32xf32> to vector<16x32xf32>
    %36 = vector.shape_cast %33 : vector<16x32xf32> to vector<1x16x32xf32>
    tpu.vector_store %arg7[%c0_17, %c0_18, %c0_19], %36 {strides = array<i32>} : memref<1x16x32xf32, #tpu.memory_space<vmem>>, vector<1x16x32xf32>,
    return
  }
  func.func @transform_0(%arg0: i32) -> (i32, i32, i32) {
    %c0_i32 = arith.constant 0 : i32
    %c0_i32_0 = arith.constant 0 : i32
    %c0_i32_1 = arith.constant 0 : i32
    return %arg0, %c0_i32, %c0_i32_0 : i32, i32, i32
  }
  func.func @transform_1(%arg0: i32) -> (i32, i32) {
    %c0_i32 = arith.constant 0 : i32
    %c0_i32_0 = arith.constant 0 : i32
    %c0_i32_1 = arith.constant 0 : i32
    return %c0_i32, %c0_i32_0 : i32, i32
  }
  func.func @transform_2(%arg0: i32) -> (i32, i32) {
    %c0_i32 = arith.constant 0 : i32
    %c0_i32_0 = arith.constant 0 : i32
    %c0_i32_1 = arith.constant 0 : i32
    return %c0_i32, %c0_i32_0 : i32, i32
  }
  func.func @transform_3(%arg0: i32) -> (i32, i32) {
    %c0_i32 = arith.constant 0 : i32
    %c0_i32_0 = arith.constant 0 : i32
    %c0_i32_1 = arith.constant 0 : i32
    return %c0_i32, %c0_i32_0 : i32, i32
  }
  func.func @transform_4(%arg0: i32) -> (i32, i32) {
    %c0_i32 = arith.constant 0 : i32
    %c0_i32_0 = arith.constant 0 : i32
    %c0_i32_1 = arith.constant 0 : i32
    return %c0_i32, %c0_i32_0 : i32, i32
  }
  func.func @transform_5(%arg0: i32) -> (i32, i32) {
    %c0_i32 = arith.constant 0 : i32
    %c0_i32_0 = arith.constant 0 : i32
    %c0_i32_1 = arith.constant 0 : i32
    return %c0_i32, %c0_i32_0 : i32, i32
  }
  func.func @transform_6(%arg0: i32) -> (i32, i32, i32) {
    %c0_i32 = arith.constant 0 : i32
    %c0_i32_0 = arith.constant 0 : i32
    %c0_i32_1 = arith.constant 0 : i32
    return %arg0, %c0_i32, %c0_i32_0 : i32, i32, i32
  }
}

</mosaic_0001>

<llo_original>
// kernel: tpu_custom_call.1
$region0: #{tpu_custom_call.1}
  #allocation0 [shape = 'u32[]', space=smem, size = 0x4, offset = 0x4, fixed_abs, tag = 'smem constant byte address 0x4 - core index']
  #allocation1 [shape = 'u32[72,128]{1,0:T(1,128)}', space=vmem, size = 0x9000, scoped, tag = 'internal scratch']
  %s0 = inlined_call_operand.hbm [shape: f32[2,16,24], index: 0, kind: input, shape index: {}]
  %s1 = inlined_call_operand.hbm [shape: bf16[24,32], index: 1, kind: input, shape index: {}]
  %s2 = inlined_call_operand.vmem [shape: f32[1,32], index: 2, kind: input, shape index: {}]
  %s3 = inlined_call_operand.vmem [shape: f32[1,32], index: 3, kind: input, shape index: {}]
  %s4 = inlined_call_operand.vmem [shape: f32[1,32], index: 4, kind: input, shape index: {}]
  %s5 = inlined_call_operand.hbm [shape: f32[16,32], index: 5, kind: input, shape index: {}]
  %s6 = inlined_call_operand.hbm [shape: f32[2,16,32], index: 6, kind: output, shape index: {}]
  %s7 = sld [smem:[#allocation0]]
  $region69: #{tpu_custom_call.1} parent=0
    _
  %s9 = ssub.s32 1, %s7
  %s10 = scalar_select 0, %s9, %s7
  $region1: #{tpu_custom_call.1} parent=0
    #allocation2 [shape = 'u8[16384]{0}', space=vmem, size = 0x4000, scoped, tag = 'input window, operand 0']
    #allocation3 [shape = 's32[2]{0}', space=sflag, size = 0x8, scoped, tag = 'scoped memory for tpu_custom_call.1']
    #allocation4 [shape = 's32[2]{0}', space=sflag, size = 0x8, scoped, tag = 'scoped memory for tpu_custom_call.1']
    #allocation5 [shape = 'u8[6144]{0}', space=vmem, size = 0x1800, scoped, tag = 'input window, operand 1, single buffered']
    #allocation6 [shape = 's32[1]{0}', space=sflag, size = 0x4, scoped, tag = 'scoped memory for tpu_custom_call.1']
    #allocation7 [shape = 'u8[8192]{0}', space=vmem, size = 0x2000, scoped, tag = 'input window, operand 5, single buffered']
    #allocation8 [shape = 'u8[16384]{0}', space=vmem, size = 0x4000, scoped, tag = 'output window, operand 0']
    %11 = vsyncpa [#allocation3], 0
    %s12 = scalar_lea.sflag [#allocation3], 1
    %13 = vsyncpa %s12, 0
    %14 = vsyncpa [#allocation6], 0
    %15 = vsyncpa [#allocation4], 0
    %s16 = scalar_lea.sflag [#allocation4], 1
    %17 = vsyncpa %s16, 0
    loop: start=0, step=1, limit=4
    $region2: #{tpu_custom_call.1} parent=1 // loop_pre_header
      _
    $region3: #{tpu_custom_call.1} parent=1 // loop_header
      %s19 = sphi 0, %s23
      %p20 = scmp.ge.s32.totalorder %s19, 4
      %s29 = sphi 0, %s31
      %s32 = sphi 0, %s29
      %s33 = sphi 0, %s32
      %s49 = sphi 0, %s33
      %s53 = sphi 0, %s53
      %s55 = sphi 0, %s53
      %s56 = sphi 0, %s55
      %s70 = sphi 0, %s56
      %s74 = sphi 0, %s74
      %s76 = sphi 0, %s74
      %s77 = sphi 0, %s76
      %s91 = sphi 0, %s77
      %s95 = sphi 0, %s95
      %s97 = sphi 0, %s95
      %s98 = sphi 0, %s97
      %s112 = sphi 0, %s98
      %s116 = sphi 0, %s116
      %s118 = sphi 0, %s116
      %s119 = sphi 0, %s118
      %s133 = sphi 0, %s119
      %s137 = sphi 0, %s137
      %s139 = sphi 0, %s137
      %s140 = sphi 0, %s139
      %s154 = sphi 0, %s140
      %s160 = sphi 0, %s162
      %s163 = sphi 0, %s160
      %s164 = sphi 0, %s163
      %s180 = sphi 0, %s164
    $region4: #{tpu_custom_call.1} parent=1 // loop_header_branch
      %22 = sbr.rel (%p20) target = $region8
    $region5: #{tpu_custom_call.1} parent=1 // loop_body
      %s24 = ssub.s32 %s19, 1
      %s25 = ssub.s32 %s19, 2
      %s26 = sadd.s32 %s19, 1
      %s27 = ssub.s32 %s19, %s26
      %p28 = scmp.eq.s32.totalorder %s27, 0
      %s30 = sadd.s32 %s29, 1
      %s31 = scalar_select %p28, %s29, %s30
      %p34 = pneg %p28
      %p35 = scmp.eq.s32.totalorder %s19, 1
      %p36 = por %p34, %p35
      %p37 = scmp.ne.s32.totalorder %s29, %s32
      %p38 = scmp.eq.s32.totalorder %s19, 0
      %p39 = por %p37, %p38
      %p40 = scmp.ne.s32.totalorder %s29, %s32
      %p41 = scmp.eq.s32.totalorder %s24, 1
      %p42 = por %p40, %p41
      %p43 = scmp.ne.s32.totalorder %s32, %s33
      %p44 = scmp.eq.s32.totalorder %s24, 0
      %p45 = por %p43, %p44
      %p46 = scmp.ne.s32.totalorder %s32, %s33
      %p47 = scmp.eq.s32.totalorder %s25, 1
      %p48 = por %p46, %p47
      %p50 = scmp.ne.s32.totalorder %s33, %s49
      %p51 = scmp.eq.s32.totalorder %s25, 0
      %p52 = por %p50, %p51
      %s54 = sadd.s32 %s53, 1
      %p57 = scmp.eq.s32.totalorder %s19, 1
      %p58 = scmp.ne.s32.totalorder %s53, %s55
      %p59 = scmp.eq.s32.totalorder %s19, 0
      %p60 = por %p58, %p59
      %p61 = scmp.ne.s32.totalorder %s53, %s55
      %p62 = scmp.eq.s32.totalorder %s24, 1
      %p63 = por %p61, %p62
      %p64 = scmp.ne.s32.totalorder %s55, %s56
      %p65 = scmp.eq.s32.totalorder %s24, 0
      %p66 = por %p64, %p65
      %p67 = scmp.ne.s32.totalorder %s55, %s56
      %p68 = scmp.eq.s32.totalorder %s25, 1
      %p69 = por %p67, %p68
      %p71 = scmp.ne.s32.totalorder %s56, %s70
      %p72 = scmp.eq.s32.totalorder %s25, 0
      %p73 = por %p71, %p72
      %s75 = sadd.s32 %s74, 1
      %p78 = scmp.eq.s32.totalorder %s19, 1
      %p79 = scmp.ne.s32.totalorder %s74, %s76
      %p80 = scmp.eq.s32.totalorder %s19, 0
      %p81 = por %p79, %p80
      %p82 = scmp.ne.s32.totalorder %s74, %s76
      %p83 = scmp.eq.s32.totalorder %s24, 1
      %p84 = por %p82, %p83
      %p85 = scmp.ne.s32.totalorder %s76, %s77
      %p86 = scmp.eq.s32.totalorder %s24, 0
      %p87 = por %p85, %p86
      %p88 = scmp.ne.s32.totalorder %s76, %s77
      %p89 = scmp.eq.s32.totalorder %s25, 1
      %p90 = por %p88, %p89
      %p92 = scmp.ne.s32.totalorder %s77, %s91
      %p93 = scmp.eq.s32.totalorder %s25, 0
      %p94 = por %p92, %p93
      %s96 = sadd.s32 %s95, 1
      %p99 = scmp.eq.s32.totalorder %s19, 1
      %p100 = scmp.ne.s32.totalorder %s95, %s97
      %p101 = scmp.eq.s32.totalorder %s19, 0
      %p102 = por %p100, %p101
      %p103 = scmp.ne.s32.totalorder %s95, %s97
      %p104 = scmp.eq.s32.totalorder %s24, 1
      %p105 = por %p103, %p104
      %p106 = scmp.ne.s32.totalorder %s97, %s98
      %p107 = scmp.eq.s32.totalorder %s24, 0
      %p108 = por %p106, %p107
      %p109 = scmp.ne.s32.totalorder %s97, %s98
      %p110 = scmp.eq.s32.totalorder %s25, 1
      %p111 = por %p109, %p110
      %p113 = scmp.ne.s32.totalorder %s98, %s112
      %p114 = scmp.eq.s32.totalorder %s25, 0
      %p115 = por %p113, %p114
      %s117 = sadd.s32 %s116, 1
      %p120 = scmp.eq.s32.totalorder %s19, 1
      %p121 = scmp.ne.s32.totalorder %s116, %s118
      %p122 = scmp.eq.s32.totalorder %s19, 0
      %p123 = por %p121, %p122
      %p124 = scmp.ne.s32.totalorder %s116, %s118
      %p125 = scmp.eq.s32.totalorder %s24, 1
      %p126 = por %p124, %p125
      %p127 = scmp.ne.s32.totalorder %s118, %s119
      %p128 = scmp.eq.s32.totalorder %s24, 0
      %p129 = por %p127, %p128
      %p130 = scmp.ne.s32.totalorder %s118, %s119
      %p131 = scmp.eq.s32.totalorder %s25, 1
      %p132 = por %p130, %p131
      %p134 = scmp.ne.s32.totalorder %s119, %s133
      %p135 = scmp.eq.s32.totalorder %s25, 0
      %p136 = por %p134, %p135
      %s138 = sadd.s32 %s137, 1
      %p141 = scmp.eq.s32.totalorder %s19, 1
      %p142 = scmp.ne.s32.totalorder %s137, %s139
      %p143 = scmp.eq.s32.totalorder %s19, 0
      %p144 = por %p142, %p143
      %p145 = scmp.ne.s32.totalorder %s137, %s139
      %p146 = scmp.eq.s32.totalorder %s24, 1
      %p147 = por %p145, %p146
      %p148 = scmp.ne.s32.totalorder %s139, %s140
      %p149 = scmp.eq.s32.totalorder %s24, 0
      %p150 = por %p148, %p149
      %p151 = scmp.ne.s32.totalorder %s139, %s140
      %p152 = scmp.eq.s32.totalorder %s25, 1
      %p153 = por %p151, %p152
      %p155 = scmp.ne.s32.totalorder %s140, %s154
      %p156 = scmp.eq.s32.totalorder %s25, 0
      %p157 = por %p155, %p156
      %s158 = ssub.s32 %s19, %s26
      %p159 = scmp.eq.s32.totalorder %s158, 0
      %s161 = sadd.s32 %s160, 1
      %s162 = scalar_select %p159, %s160, %s161
      %p165 = pneg %p159
      %p166 = scmp.eq.s32.totalorder %s19, 1
      %p167 = por %p165, %p166
      %p168 = scmp.ne.s32.totalorder %s160, %s163
      %p169 = scmp.eq.s32.totalorder %s19, 0
      %p170 = por %p168, %p169
      %p171 = scmp.ne.s32.totalorder %s160, %s163
      %p172 = scmp.eq.s32.totalorder %s24, 1
      %p173 = por %p171, %p172
      %p174 = scmp.ne.s32.totalorder %s163, %s164
      %p175 = scmp.eq.s32.totalorder %s24, 0
      %p176 = por %p174, %p175
      %p177 = scmp.ne.s32.totalorder %s163, %s164
      %p178 = scmp.eq.s32.totalorder %s25, 1
      %p179 = por %p177, %p178
      %p181 = scmp.ne.s32.totalorder %s164, %s180
      %p182 = scmp.eq.s32.totalorder %s25, 0
      %p183 = por %p181, %p182
      %p184 = scmp.le.s32.totalorder 1, %s19
      %p185 = scmp.lt.s32.totalorder %s19, 3
      %p186 = pnand %p184, %p185
      %p187 = pneg %p186
      // Predicated region
      $region9: #{tpu_custom_call.1} parent=5 // pred_check
        _
      $region10: #{tpu_custom_call.1} parent=5 // pred_check_branch
        %189 = sbr.rel (%p186) target = $region12
      $region11: #{tpu_custom_call.1} parent=5 // pred_region
        %s190 = ssub.s32 %s19, 1
        // Predicated region
        $region13: #{tpu_custom_call.1} parent=11 // pred_check
          %p191 = pneg %p66
        $region14: #{tpu_custom_call.1} parent=11 // pred_check_branch
          %193 = sbr.rel (%p191) target = $region16
        $region15: #{tpu_custom_call.1} parent=11 // pred_region
          %195 = vsyncadd [#allocation6], 0
          %s196 = sshll.u32 %s1, 4
          %s197 = int_to_ptr.hbm [resolvable:$true] %s196
          %s198 = sshll.u32 [#allocation5], 4
          %s199 = int_to_ptr.vmem [resolvable:$true] %s198
          %204 = dma.hbm_to_vmem [thread:$0]  %s197, 192, %s199, [#allocation6], 64, 64, 4
        $region16: #{tpu_custom_call.1} parent=11 // pred_fallthru
          _
        // Predicated region
        $region17: #{tpu_custom_call.1} parent=11 // pred_check
          %p205 = pneg %p87
        $region18: #{tpu_custom_call.1} parent=11 // pred_check_branch
          %207 = sbr.rel (%p205) target = $region20
        $region19: #{tpu_custom_call.1} parent=11 // pred_region
          _
        $region20: #{tpu_custom_call.1} parent=11 // pred_fallthru
          _
        // Predicated region
        $region21: #{tpu_custom_call.1} parent=11 // pred_check
          %p208 = pneg %p108
        $region22: #{tpu_custom_call.1} parent=11 // pred_check_branch
          %210 = sbr.rel (%p208) target = $region24
        $region23: #{tpu_custom_call.1} parent=11 // pred_region
          _
        $region24: #{tpu_custom_call.1} parent=11 // pred_fallthru
          _
        // Predicated region
        $region25: #{tpu_custom_call.1} parent=11 // pred_check
          %p211 = pneg %p129
        $region26: #{tpu_custom_call.1} parent=11 // pred_check_branch
          %213 = sbr.rel (%p211) target = $region28
        $region27: #{tpu_custom_call.1} parent=11 // pred_region
          _
        $region28: #{tpu_custom_call.1} parent=11 // pred_fallthru
          _
        // Predicated region
        $region29: #{tpu_custom_call.1} parent=11 // pred_check
          %p214 = pneg %p150
        $region30: #{tpu_custom_call.1} parent=11 // pred_check_branch
          %216 = sbr.rel (%p214) target = $region32
        $region31: #{tpu_custom_call.1} parent=11 // pred_region
          %218 = vsyncadd [#allocation6], 0
          %s219 = sshll.u32 %s5, 4
          %s220 = int_to_ptr.hbm [resolvable:$true] %s219
          %s221 = sshll.u32 [#allocation7], 4
          %s222 = int_to_ptr.vmem [resolvable:$true] %s221
          %227 = dma.hbm_to_vmem [thread:$0]  %s220, 256, %s222, [#allocation6], 128, 128, 8
        $region32: #{tpu_custom_call.1} parent=11 // pred_fallthru
          _
      $region12: #{tpu_custom_call.1} parent=5 // pred_fallthru
        _
      %p228 = scmp.lt.s32.totalorder %s19, 2
      // Predicated region
      $region33: #{tpu_custom_call.1} parent=5 // pred_check
        %p229 = pneg %p228
      $region34: #{tpu_custom_call.1} parent=5 // pred_check_branch
        %231 = sbr.rel (%p229) target = $region36
      $region35: #{tpu_custom_call.1} parent=5 // pred_region
        // Predicated region
        $region37: #{tpu_custom_call.1} parent=35 // pred_check
          %p232 = pneg %p39
        $region38: #{tpu_custom_call.1} parent=35 // pred_check_branch
          %234 = sbr.rel (%p232) target = $region40
        $region39: #{tpu_custom_call.1} parent=35 // pred_region
          %s235 = sand.u32 %s29, 1
          %s236 = scalar_lea.sflag [#allocation3], %s235
          %s237 = sand.u32 %s29, 1
          %s238 = smul.addr %s237, 16
          %s239 = scalar_lea.vmem [#allocation2], %s238
          %241 = vsyncadd %s236, 0
          %s242 = smul.addr %s19, 2
          %s243 = smul.addr %s242, 8
          %s244 = scalar_lea.hbm %s0, %s243
          %s245 = sshll.u32 %s244, 4
          %s246 = int_to_ptr.hbm [resolvable:$true] %s245
          %s247 = sshll.u32 %s239, 4
          %s248 = int_to_ptr.vmem [resolvable:$true] %s247
          %253 = dma.hbm_to_vmem [thread:$0]  %s246, 256, %s248, %s236, 128, 128, 8
        $region40: #{tpu_custom_call.1} parent=35 // pred_fallthru
          _
      $region36: #{tpu_custom_call.1} parent=5 // pred_fallthru
        _
      %p254 = scmp.le.s32.totalorder 1, %s19
      %p255 = scmp.lt.s32.totalorder %s19, 3
      %p256 = pnand %p254, %p255
      %p257 = pneg %p256
      // Predicated region
      $region41: #{tpu_custom_call.1} parent=5 // pred_check
        _
      $region42: #{tpu_custom_call.1} parent=5 // pred_check_branch
        %259 = sbr.rel (%p256) target = $region44
      $region43: #{tpu_custom_call.1} parent=5 // pred_region
        %s260 = ssub.s32 %s19, 1
        %s261 = sand.u32 %s32, 1
        %s262 = scalar_lea.sflag [#allocation3], %s261
        %s263 = sand.u32 %s32, 1
        %s264 = smul.addr %s263, 16
        %s265 = scalar_lea.vmem [#allocation2], %s264
        // Predicated region
        $region45: #{tpu_custom_call.1} parent=43 // pred_check
          %p266 = pneg %p45
        $region46: #{tpu_custom_call.1} parent=43 // pred_check_branch
          %268 = sbr.rel (%p266) target = $region48
        $region47: #{tpu_custom_call.1} parent=43 // pred_region
          %270 = dma.done %s262, 256
        $region48: #{tpu_custom_call.1} parent=43 // pred_fallthru
          _
        // Predicated region
        $region49: #{tpu_custom_call.1} parent=43 // pred_check
          %p271 = pneg %p66
        $region50: #{tpu_custom_call.1} parent=43 // pred_check_branch
          %273 = sbr.rel (%p271) target = $region52
        $region51: #{tpu_custom_call.1} parent=43 // pred_region
          %275 = dma.done [#allocation6], 192
        $region52: #{tpu_custom_call.1} parent=43 // pred_fallthru
          _
        // Predicated region
        $region53: #{tpu_custom_call.1} parent=43 // pred_check
          %p276 = pneg %p150
        $region54: #{tpu_custom_call.1} parent=43 // pred_check_branch
          %278 = sbr.rel (%p276) target = $region56
        $region55: #{tpu_custom_call.1} parent=43 // pred_region
          %280 = dma.done [#allocation6], 256
        $region56: #{tpu_custom_call.1} parent=43 // pred_fallthru
          _
        %s281 = sand.u32 %s32, 1
        %s282 = scalar_lea.sflag [#allocation3], %s281
        %s283 = sand.u32 %s32, 1
        %s284 = smul.addr %s283, 16
        %s285 = scalar_lea.vmem [#allocation2], %s284
        %p286 = pneg %p45
        %p287 = pneg %p42
        %p288 = pneg %p66
        %p289 = pneg %p63
        %p290 = pneg %p87
        %p291 = pneg %p84
        %p292 = pneg %p108
        %p293 = pneg %p105
        %p294 = pneg %p129
        %p295 = pneg %p126
        %p296 = pneg %p150
        %p297 = pneg %p147
        %p298 = pneg %p176
        %p299 = pneg %p173
        %s300 = sand.u32 %s163, 1
        %s301 = scalar_lea.sflag [#allocation4], %s300
        %s302 = sand.u32 %s163, 1
        %s303 = smul.addr %s302, 16
        %s304 = scalar_lea.vmem [#allocation8], %s303
        %v306 = vld [vmem:[%s265] sm:$0xff]
        %v307 = vld [vmem:[%s265 + $0x8] sm:$0xff]
        %v308 = vpack.c.bf16 %v307, %v306
        %v309 = vld [vmem:[#allocation5] sm:$0xf]
        %v310 = vld [vmem:[#allocation5 + $0x4] sm:$0xf]
        %v311 = vld [vmem:[#allocation5 + $0x8] sm:$0xf]
        %v312 = vld [vmem:[%s2] sm:$0x1]
        %v314 = vperm.slane %v312, 0
        %v319 = vunpack.c.l.b16 %v309
        %v320 = vunpack.c.l.b16 %v310
        %v321 = vunpack.c.l.b16 %v311
        %v322 = vpack.c.b16 %v320, %v319
        %v323 = vpack.c.b16 %v321, %v321
        %vm325 = vcmask 195584
        %v327 = vsel %vm325, %v308, 0
        %vm329 = vcmask 1043456
        %v331 = vsel %vm329, %v323, 0
        %333 = vmatpush.bf16.msra.mxu0 0
        %334 = vmatpush.bf16.msra.mxu0 0
        %335 = vmatpush.bf16.msra.mxu0 0
        %336 = vmatpush.bf16.msra.mxu0 0
        %337 = vmatpush.bf16.msra.mxu0 0
        %338 = vmatpush.bf16.msra.mxu0 0
        %339 = vmatpush.bf16.msra.mxu0 %v331
        %340 = vmatpush.bf16.msra.mxu0 %v322
        %341 = vmatmul.bf16.gmra.mxu0 %v327
        %v342 = vpop.f32.mrf.mxu0
        %v343 = vadd.f32 %v314, %v342
        %v344 = vpop.f32.mrf.mxu0
        %v345 = vadd.f32 %v314, %v344
        %346 = vdwg.mxu0
        %vm347 = vcmask 261120
        %v348 = vsel %vm347, %v343, 0.0
        %349 = vadd.xlane.f32.xlu0 %v348
        %v350 = vpop.xlane.xlu0 %349
        %v351 = vsel %vm347, %v345, 0.0
        %352 = vadd.xlane.f32.xlu0 %v351
        %v353 = vpop.xlane.xlu0 %352
        %v354 = vrcp.pop 32.0
        %v355 = vmul.f32 32.0, %v354
        %v356 = vsub.f32 1.0, %v355
        %v357 = vmul.f32 %v354, %v356
        %v358 = vadd.f32 %v354, %v357
        %vm359 = vweird.f32 %v354
        %v360 = vsel %vm359, %v354, %v358
        %v361 = vmul.f32 %v350, %v360
        %v362 = vmul.f32 %v353, %v360
        %v363 = vsub.f32 %v343, %v361
        %v364 = vsub.f32 %v345, %v362
        %v365 = vmul.f32 %v363, %v363
        %v366 = vmul.f32 %v364, %v364
        %v367 = vsel %vm347, %v365, 0.0
        %368 = vadd.xlane.f32.xlu0 %v367
        %v369 = vpop.xlane.xlu0 %368
        %v370 = vsel %vm347, %v366, 0.0
        %371 = vadd.xlane.f32.xlu0 %v370
        %v372 = vpop.xlane.xlu0 %371
        %v373 = vmul.f32 %v369, %v360
        %v374 = vmul.f32 %v372, %v360
        %v375 = vadd.f32 %v373, 1e-05
        %v376 = vadd.f32 %v374, 1e-05
        %v377 = vrsqrt.pop %v375
        %v378 = vmul.f32 %v377, %v375
        %v379 = vmul.f32 %v378, %v377
        %v380 = vmul.f32 0.5, %v379
        %v381 = vsub.f32 1.5, %v380
        %v382 = vmul.f32 %v377, %v381
        %vm383 = vweird.f32 %v375
        %vm384 = vweird.f32 %v377
        %vm385 = vmor %vm383, %vm384
        %v386 = vsel %vm385, %v377, %v382
        %v387 = vrsqrt.pop %v376
        %v388 = vmul.f32 %v387, %v376
        %v389 = vmul.f32 %v388, %v387
        %v390 = vmul.f32 0.5, %v389
        %v391 = vsub.f32 1.5, %v390
        %v392 = vmul.f32 %v387, %v391
        %vm393 = vweird.f32 %v376
        %vm394 = vweird.f32 %v387
        %vm395 = vmor %vm393, %vm394
        %v396 = vsel %vm395, %v387, %v392
        %v397 = vmul.f32 %v363, %v386
        %v398 = vmul.f32 %v364, %v396
        %v399 = vld [vmem:[%s3] sm:$0x1]
        %v401 = vperm.slane %v399, 0
        %v403 = vmul.f32 %v397, %v401
        %v404 = vmul.f32 %v398, %v401
        %v405 = vld [vmem:[%s4] sm:$0x1]
        %v407 = vperm.slane %v405, 0
        %v409 = vadd.f32 %v403, %v407
        %v410 = vadd.f32 %v404, %v407
        %v411 = vld [vmem:[#allocation7] sm:$0xff]
        %v412 = vld [vmem:[#allocation7 + $0x8] sm:$0xff]
        %v413 = vadd.f32 %v409, %v411
        %v414 = vadd.f32 %v410, %v412
        %415 = vst.msk [vmem:[%s304] sm:$0xff] %vm347, %v413
        %416 = vst.msk [vmem:[%s304 + $0x8] sm:$0xff] %vm347, %v414
        %s417 = sand.u32 %s163, 1
        %s418 = scalar_lea.sflag [#allocation4], %s417
        %s419 = sand.u32 %s163, 1
        %s420 = smul.addr %s419, 16
        %s421 = scalar_lea.vmem [#allocation8], %s420
        // Predicated region
        $region57: #{tpu_custom_call.1} parent=43 // pred_check
          %p422 = pneg %p173
        $region58: #{tpu_custom_call.1} parent=43 // pred_check_branch
          %424 = sbr.rel (%p422) target = $region60
        $region59: #{tpu_custom_call.1} parent=43 // pred_region
          %426 = vsyncadd %s418, 0
          %s427 = smul.addr %s24, 2
          %s428 = smul.addr %s427, 8
          %s429 = scalar_lea.hbm %s6, %s428
          %s430 = sshll.u32 %s421, 4
          %s431 = int_to_ptr.vmem [resolvable:$true] %s430
          %s432 = sshll.u32 %s429, 4
          %s433 = int_to_ptr.hbm [resolvable:$true] %s432
          %438 = dma.vmem_to_hbm [thread:$0]  %s431, 256, %s433, %s418, 128, 128, 8
        $region60: #{tpu_custom_call.1} parent=43 // pred_fallthru
          _
      $region44: #{tpu_custom_call.1} parent=5 // pred_fallthru
        _
      %p439 = scmp.le.s32.totalorder 2, %s19
      // Predicated region
      $region61: #{tpu_custom_call.1} parent=5 // pred_check
        %p440 = pneg %p439
      $region62: #{tpu_custom_call.1} parent=5 // pred_check_branch
        %442 = sbr.rel (%p440) target = $region64
      $region63: #{tpu_custom_call.1} parent=5 // pred_region
        %s443 = ssub.s32 %s19, 2
        // Predicated region
        $region65: #{tpu_custom_call.1} parent=63 // pred_check
          %p444 = pneg %p179
        $region66: #{tpu_custom_call.1} parent=63 // pred_check_branch
          %446 = sbr.rel (%p444) target = $region68
        $region67: #{tpu_custom_call.1} parent=63 // pred_region
          %s447 = sand.u32 %s164, 1
          %s448 = scalar_lea.sflag [#allocation4], %s447
          %s449 = sand.u32 %s164, 1
          %s450 = smul.addr %s449, 16
          %s451 = scalar_lea.vmem [#allocation8], %s450
          %453 = dma.done %s448, 256
        $region68: #{tpu_custom_call.1} parent=63 // pred_fallthru
          _
      $region64: #{tpu_custom_call.1} parent=5 // pred_fallthru
        _
    $region6: #{tpu_custom_call.1} parent=1 // loop_footer
      %s23 = sadd.s32 1, %s19
    $region7: #{tpu_custom_call.1} parent=1 // loop_footer_branch
      %18 = sbr.rel target = $region3
    $region8: #{tpu_custom_call.1} parent=1 // loop_exit
      _
    %454 = vsyncpa [#allocation3], 1
    %s455 = scalar_lea.sflag [#allocation3], 1
    %456 = vsyncpa %s455, 1
    %457 = vsyncpa [#allocation6], 1
    %458 = vsyncpa [#allocation4], 1
    %s459 = scalar_lea.sflag [#allocation4], 1
    %460 = vsyncpa %s459, 1

</llo_original>
